<compile_context>
chip_gen: v7x
topology: tpu7x:2x2x1
jax: 0.10.0
libtpu: 0.0.40
codegen_flags: <defaults>
</compile_context>

<pallas_src>
import functools

import jax
import jax.numpy as jnp
from jax.experimental import pallas as pl
from jax.experimental.pallas import tpu as pltpu


def _addnorm_kernel(seed_ref, x_ref, y_ref, g_ref, b_ref, o_ref,
                    *, dropout_p, training, eps):
    """One row-tile: out = LayerNorm(dropout(Y) + X) along the last dim."""
    x = x_ref[...].astype(jnp.float32)            # (rt, H)
    y = y_ref[...].astype(jnp.float32)            # (rt, H)

    if training and dropout_p > 0.0:
        rt, h_dim = y.shape
        # Global element index (unique per element across the whole slab).
        row0 = (pl.program_id(0) * rt).astype(jnp.uint32)
        r = jax.lax.broadcasted_iota(jnp.int32, (rt, h_dim), 0).astype(jnp.uint32)
        c = jax.lax.broadcasted_iota(jnp.int32, (rt, h_dim), 1).astype(jnp.uint32)
        gidx = (row0 + r) * jnp.uint32(h_dim) + c

        # Stateless hash (murmur3 fmix32) of (index, seed): uniform uint32.
        seed_u = seed_ref[0].astype(jnp.uint32)
        hsh = gidx ^ (seed_u * jnp.uint32(0x9E3779B9))
        hsh = hsh ^ (hsh >> jnp.uint32(16))
        hsh = hsh * jnp.uint32(0x85EBCA6B)
        hsh = hsh ^ (hsh >> jnp.uint32(13))
        hsh = hsh * jnp.uint32(0xC2B2AE35)
        hsh = hsh ^ (hsh >> jnp.uint32(16))

        # Integer-threshold keep decision: P(keep) = 1 - p.
        thresh = jnp.uint32(min(int(round(dropout_p * (1 << 32))), (1 << 32) - 1))
        keep = hsh >= thresh
        scale = jnp.float32(1.0 / (1.0 - dropout_p))
        y = jnp.where(keep, y * scale, jnp.float32(0.0))

    z = x + y                                     # residual add

    # LayerNorm over the hidden dim (biased variance, torch default eps).
    mean = jnp.mean(z, axis=-1, keepdims=True)
    zc = z - mean
    var = jnp.mean(zc * zc, axis=-1, keepdims=True)
    inv = jax.lax.rsqrt(var + jnp.float32(eps))

    gamma = g_ref[...].astype(jnp.float32)        # (1, H)
    beta = b_ref[...].astype(jnp.float32)         # (1, H)
    o_ref[...] = ((zc * inv) * gamma + beta).astype(o_ref.dtype)


def _vmem_capacity_bytes():
    """Physical VMEM per TensorCore; conservative fallback if not queryable."""
    try:
        return int(pltpu.get_tpu_info().vmem_capacity_bytes)
    except Exception:
        return 64 << 20  # v7x per-TC (smallest of v5e/v6e/v7x) — safe default


def _pick_row_tile(rows, hidden, itemsize, vmem_bytes, max_rows=4096):
    """Row tile so one (rt, H) block is a few MiB but the pipeline fits VMEM.

    Budget ~ vmem/16: 2 inputs + 1 output double-buffered (6 blocks) plus a
    few f32 temporaries the compiler may materialize, with headroom.
    """
    target_block_bytes = max(vmem_bytes // 16, 1 << 20)
    rt = target_block_bytes // max(1, hidden * itemsize)
    rt = max(8, min(int(rt), max_rows))
    rt = (rt // 8) * 8
    if rows <= rt:
        return ((rows + 7) // 8) * 8      # single tile covering all rows
    return rt


def add_norm(x, y, gamma, beta, *, dropout_p=0.1, training=False,
             eps=1e-5, seed=0, row_tile=None):
    """AddNorm forward: LayerNorm(dropout(Y) + X).  x, y: (..., H); gamma, beta: (H,)."""
    assert x.shape == y.shape
    H = x.shape[-1]
    assert gamma.shape == (H,) and beta.shape == (H,)
    # NOTE: for best lane utilization H should be a multiple of 128; smaller H
    # (like the toy test below) still runs correctly, just at lower lane density.
    # TODO(synk): optionally pad H to a multiple of 128 with masked LN statistics.

    orig_shape = x.shape
    x2 = x.reshape(-1, H)
    y2 = y.reshape(-1, H)
    rows = x2.shape[0]

    vmem_cap = _vmem_capacity_bytes()
    if row_tile is None:
        row_tile = _pick_row_tile(rows, H, x.dtype.itemsize, vmem_cap)

    # Pad rows up to a tile multiple (padded rows produce finite garbage that
    # is sliced off below), instead of asserting divisibility.
    rows_padded = pl.cdiv(rows, row_tile) * row_tile
    if rows_padded != rows:
        pad = rows_padded - rows
        x2 = jnp.pad(x2, ((0, pad), (0, 0)))
        y2 = jnp.pad(y2, ((0, pad), (0, 0)))

    g2 = gamma.reshape(1, H)
    b2 = beta.reshape(1, H)
    seed_arr = jnp.array([seed], dtype=jnp.int32)

    kernel = functools.partial(
        _addnorm_kernel, dropout_p=float(dropout_p),
        training=bool(training), eps=float(eps))

    # Raise the scoped-VMEM limit so large tiles compile, leaving headroom
    # below physical capacity (important on v7x: 64 MiB/TC).
    vmem_limit = min(int(vmem_cap * 0.75), 100 << 20)

    out = pl.pallas_call(
        kernel,
        out_shape=jax.ShapeDtypeStruct((rows_padded, H), x.dtype),
        grid_spec=pltpu.PrefetchScalarGridSpec(
            num_scalar_prefetch=1,                      # seed -> SMEM
            grid=(rows_padded // row_tile,),
            in_specs=[
                pl.BlockSpec((row_tile, H), lambda i, seed: (i, 0)),  # X
                pl.BlockSpec((row_tile, H), lambda i, seed: (i, 0)),  # Y
                pl.BlockSpec((1, H), lambda i, seed: (0, 0)),         # gamma
                pl.BlockSpec((1, H), lambda i, seed: (0, 0)),         # beta
            ],
            out_specs=pl.BlockSpec((row_tile, H), lambda i, seed: (i, 0)),
        ),
        compiler_params=pltpu.CompilerParams(
            # Stateless per-element hash -> grid steps are order/core
            # independent, so "parallel" is safe (uses both TCs on v7x).
            dimension_semantics=("parallel",),
            vmem_limit_bytes=vmem_limit),
    )(seed_arr, x2, y2, g2, b2)

    if rows_padded != rows:
        out = out[:rows]
    return out.reshape(orig_shape)


def _reference_eval(x, y, gamma, beta, eps=1e-5):
    """Pure-JAX reference for eval mode (dropout = identity)."""
    z = (y + x).astype(jnp.float32)
    mean = jnp.mean(z, axis=-1, keepdims=True)
    var = jnp.mean((z - mean) ** 2, axis=-1, keepdims=True)
    normed = (z - mean) * jax.lax.rsqrt(var + eps)
    return normed * gamma + beta


if __name__ == "__main__":
    key = jax.random.PRNGKey(0)
    kx, ky, kg, kb = jax.random.split(key, 4)

    batch, seq, hidden = 2, 8, 32   # norm_shape = hidden = 32
    x = jax.random.normal(kx, (batch, seq, hidden), dtype=jnp.float32)
    y = jax.random.normal(ky, (batch, seq, hidden), dtype=jnp.float32)
    # Deterministic affine params (PyTorch default would be ones/zeros).
    gamma = 1.0 + 0.1 * jax.random.normal(kg, (hidden,), dtype=jnp.float32)
    beta = 0.1 * jax.random.normal(kb, (hidden,), dtype=jnp.float32)

    # Eval mode (dropout is identity): check numerics against pure-JAX reference.
    out_eval = add_norm(x, y, gamma, beta, dropout_p=0.1, training=False)
    out_eval = jax.block_until_ready(out_eval)
    ref = _reference_eval(x, y, gamma, beta)
    assert out_eval.shape == x.shape
    assert jnp.allclose(out_eval, ref, atol=1e-5, rtol=1e-5), "eval-mode mismatch"

    # Training mode: exercises in-kernel (hash-based) inverted dropout, p=0.1.
    # RNG differs from torch's, so no bitwise parity — semantics match.
    out_train = add_norm(x, y, gamma, beta, dropout_p=0.1, training=True, seed=1234)
    out_train = jax.block_until_ready(out_train)
    assert out_train.shape == x.shape
    assert bool(jnp.all(jnp.isfinite(out_train)))

    print("KERNEL_OK")
</pallas_src>

<mosaic_0001>
module attributes {stable_mosaic.version = 11 : i64} {
  func.func @_addnorm_kernel(%arg0: i32, %arg1: memref<1xi32, #tpu.memory_space<smem>>, %arg2: memref<16x32xf32, #tpu.memory_space<vmem>>, %arg3: memref<16x32xf32, #tpu.memory_space<vmem>>, %arg4: memref<1x32xf32, #tpu.memory_space<vmem>>, %arg5: memref<1x32xf32, #tpu.memory_space<vmem>>, %arg6: memref<16x32xf32, #tpu.memory_space<vmem>>) attributes {dimension_semantics = [#tpu.dimension_semantics<parallel>], iteration_bounds = array<i64: 1>, scalar_prefetch = 1 : i64, scratch_operands = 0 : i64, tpu.core_type = #tpu.core_type<tc>, window_params = [{transform_indices = @transform_0, window_bounds = array<i64: 16, 32>}, {transform_indices = @transform_1, window_bounds = array<i64: 16, 32>}, {pipeline_mode = #tpu.pipeline_mode<synchronous>, transform_indices = @transform_2, window_bounds = array<i64: 1, 32>}, {pipeline_mode = #tpu.pipeline_mode<synchronous>, transform_indices = @transform_3, window_bounds = array<i64: 1, 32>}, {transform_indices = @transform_4, window_bounds = array<i64: 16, 32>}]} {
    %c0 = arith.constant 0 : index
    %c0_0 = arith.constant 0 : index
    %0 = vector.load %arg2[%c0, %c0_0] : memref<16x32xf32, #tpu.memory_space<vmem>>, vector<16x32xf32>
    %c0_1 = arith.constant 0 : index
    %c0_2 = arith.constant 0 : index
    %1 = vector.load %arg3[%c0_1, %c0_2] : memref<16x32xf32, #tpu.memory_space<vmem>>, vector<16x32xf32>
    %2 = arith.addf %0, %1 : vector<16x32xf32>
    %cst = arith.constant dense<0.000000e+00> : vector<16xf32>
    %3 = vector.multi_reduction <add>, %2, %cst [1] : vector<16x32xf32> to vector<16xf32>
    %4 = vector.shape_cast %3 : vector<16xf32> to vector<16x1xf32>
    %cst_3 = arith.constant 3.200000e+01 : f32
    %5 = vector.broadcast %cst_3 : f32 to vector<16x1xf32>
    %6 = arith.divf %4, %5 : vector<16x1xf32>
    %7 = vector.broadcast %6 : vector<16x1xf32> to vector<16x32xf32>
    %8 = arith.subf %2, %7 : vector<16x32xf32>
    %9 = arith.mulf %8, %8 : vector<16x32xf32>
    %cst_4 = arith.constant dense<0.000000e+00> : vector<16xf32>
    %10 = vector.multi_reduction <add>, %9, %cst_4 [1] : vector<16x32xf32> to vector<16xf32>
    %11 = vector.shape_cast %10 : vector<16xf32> to vector<16x1xf32>
    %cst_5 = arith.constant 3.200000e+01 : f32
    %12 = vector.broadcast %cst_5 : f32 to vector<16x1xf32>
    %13 = arith.divf %11, %12 : vector<16x1xf32>
    %cst_6 = arith.constant 9.99999974E-6 : f32
    %14 = vector.broadcast %cst_6 : f32 to vector<16x1xf32>
    %15 = arith.addf %13, %14 : vector<16x1xf32>
    %16 = math.rsqrt %15 : vector<16x1xf32>
    %c0_7 = arith.constant 0 : index
    %c0_8 = arith.constant 0 : index
    %17 = vector.load %arg4[%c0_7, %c0_8] : memref<1x32xf32, #tpu.memory_space<vmem>>, vector<1x32xf32>
    %c0_9 = arith.constant 0 : index
    %c0_10 = arith.constant 0 : index
    %18 = vector.load %arg5[%c0_9, %c0_10] : memref<1x32xf32, #tpu.memory_space<vmem>>, vector<1x32xf32>
    %19 = vector.broadcast %16 : vector<16x1xf32> to vector<16x32xf32>
    %20 = arith.mulf %8, %19 : vector<16x32xf32>
    %21 = vector.broadcast %17 : vector<1x32xf32> to vector<16x32xf32>
    %22 = arith.mulf %20, %21 : vector<16x32xf32>
    %23 = vector.broadcast %18 : vector<1x32xf32> to vector<16x32xf32>
    %24 = arith.addf %22, %23 : vector<16x32xf32>
    %c0_11 = arith.constant 0 : index
    %c0_12 = arith.constant 0 : index
    %25 = vector.load %arg6[%c0_11, %c0_12] : memref<16x32xf32, #tpu.memory_space<vmem>>, vector<16x32xf32>
    tpu.vector_store %arg6[%c0_11, %c0_12], %24 {strides = array<i32>} : memref<16x32xf32, #tpu.memory_space<vmem>>, vector<16x32xf32>,
    return
  }
  func.func @transform_0(%arg0: i32, %arg1: memref<1xi32, #tpu.memory_space<smem>>) -> (i32, i32) {
    %c0_i32 = arith.constant 0 : i32
    %c0_i32_0 = arith.constant 0 : i32
    return %arg0, %c0_i32 : i32, i32
  }
  func.func @transform_1(%arg0: i32, %arg1: memref<1xi32, #tpu.memory_space<smem>>) -> (i32, i32) {
    %c0_i32 = arith.constant 0 : i32
    %c0_i32_0 = arith.constant 0 : i32
    return %arg0, %c0_i32 : i32, i32
  }
  func.func @transform_2(%arg0: i32, %arg1: memref<1xi32, #tpu.memory_space<smem>>) -> (i32, i32) {
    %c0_i32 = arith.constant 0 : i32
    %c0_i32_0 = arith.constant 0 : i32
    %c0_i32_1 = arith.constant 0 : i32
    return %c0_i32, %c0_i32_0 : i32, i32
  }
  func.func @transform_3(%arg0: i32, %arg1: memref<1xi32, #tpu.memory_space<smem>>) -> (i32, i32) {
    %c0_i32 = arith.constant 0 : i32
    %c0_i32_0 = arith.constant 0 : i32
    %c0_i32_1 = arith.constant 0 : i32
    return %c0_i32, %c0_i32_0 : i32, i32
  }
  func.func @transform_4(%arg0: i32, %arg1: memref<1xi32, #tpu.memory_space<smem>>) -> (i32, i32) {
    %c0_i32 = arith.constant 0 : i32
    %c0_i32_0 = arith.constant 0 : i32
    return %arg0, %c0_i32 : i32, i32
  }
}

</mosaic_0001>

<llo_original>
// kernel: tpu_custom_call.1
$region0: #{tpu_custom_call.1}
  #allocation0 [shape = 'u32[]', space=smem, size = 0x4, offset = 0x4, fixed_abs, tag = 'smem constant byte address 0x4 - core index']
  #allocation1 [shape = 'u32[144,128]{1,0:T(1,128)}', space=vmem, size = 0x12000, scoped, tag = 'internal scratch']
  #allocation2 [shape = 's32[1]{0}', space=sflag, size = 0x4, scoped, tag = 'scoped memory for tpu_custom_call.1']
  #allocation3 [shape = 's32[1]{0:T(128)S(6)}', space=smem, size = 0x200, scoped, tag = 'prefetched SMEM operand 0']
  %s0 = inlined_call_operand.<no memory space> [shape: s32[1], index: 0, kind: input, shape index: {}]
  %s1 = inlined_call_operand.hbm [shape: f32[16,32], index: 1, kind: input, shape index: {}]
  %s2 = inlined_call_operand.hbm [shape: f32[16,32], index: 2, kind: input, shape index: {}]
  %s3 = inlined_call_operand.vmem [shape: f32[1,32], index: 3, kind: input, shape index: {}]
  %s4 = inlined_call_operand.vmem [shape: f32[1,32], index: 4, kind: input, shape index: {}]
  %s5 = inlined_call_operand.hbm [shape: f32[16,32], index: 5, kind: output, shape index: {}]
  %s6 = sld [smem:[#allocation0]]
  $region34: #{tpu_custom_call.1} parent=0
    _
  %s8 = ssub.s32 1, %s6
  %s9 = scalar_select 0, %s8, %s6
  %10 = sst [smem:[#allocation3]] %s0
  $region1: #{tpu_custom_call.1} parent=0
    #allocation4 [shape = 'u8[8192]{0}', space=vmem, size = 0x2000, scoped, tag = 'input window, operand 1, single buffered']
    #allocation5 [shape = 's32[1]{0}', space=sflag, size = 0x4, scoped, tag = 'scoped memory for tpu_custom_call.1']
    #allocation6 [shape = 's32[1]{0}', space=sflag, size = 0x4, scoped, tag = 'scoped memory for tpu_custom_call.1']
    #allocation7 [shape = 'u8[8192]{0}', space=vmem, size = 0x2000, scoped, tag = 'input window, operand 2, single buffered']
    #allocation8 [shape = 's32[1]{0}', space=sflag, size = 0x4, scoped, tag = 'scoped memory for tpu_custom_call.1']
    #allocation9 [shape = 'u8[8192]{0}', space=vmem, size = 0x2000, scoped, tag = 'output window, operand 0, single buffered']
    %11 = vsyncpa [#allocation5], 0
    %12 = vsyncpa [#allocation8], 0
    %13 = vsyncpa [#allocation6], 0
    // Predicated region
    $region2: #{tpu_custom_call.1} parent=1 // pred_check
      _
    $region3: #{tpu_custom_call.1} parent=1 // pred_check_branch
      %15 = sbr.rel (0) target = $region5
    $region4: #{tpu_custom_call.1} parent=1 // pred_region
      %s17 = ssub.s32 256, 256
      %18 = vsyncadd [#allocation5], %s17
      %s19 = sshll.u32 [#allocation4], 4
      %s20 = int_to_ptr.vmem [resolvable:$true] %s19
      %25 = dma.hbm_to_vmem [thread:$0]  %s1, 256, %s20, [#allocation5], 128, 128, 8
    $region5: #{tpu_custom_call.1} parent=1 // pred_fallthru
      _
    // Predicated region
    $region6: #{tpu_custom_call.1} parent=1 // pred_check
      _
    $region7: #{tpu_custom_call.1} parent=1 // pred_check_branch
      %27 = sbr.rel (0) target = $region9
    $region8: #{tpu_custom_call.1} parent=1 // pred_region
      %s29 = ssub.s32 256, 256
      %30 = vsyncadd [#allocation8], %s29
      %s31 = sshll.u32 [#allocation7], 4
      %s32 = int_to_ptr.vmem [resolvable:$true] %s31
      %37 = dma.hbm_to_vmem [thread:$0]  %s2, 256, %s32, [#allocation8], 128, 128, 8
    $region9: #{tpu_custom_call.1} parent=1 // pred_fallthru
      _
    // Predicated region
    $region10: #{tpu_custom_call.1} parent=1 // pred_check
      _
    $region11: #{tpu_custom_call.1} parent=1 // pred_check_branch
      %39 = sbr.rel (0) target = $region13
    $region12: #{tpu_custom_call.1} parent=1 // pred_region
      _
    $region13: #{tpu_custom_call.1} parent=1 // pred_fallthru
      _
    // Predicated region
    $region14: #{tpu_custom_call.1} parent=1 // pred_check
      _
    $region15: #{tpu_custom_call.1} parent=1 // pred_check_branch
      %41 = sbr.rel (0) target = $region17
    $region16: #{tpu_custom_call.1} parent=1 // pred_region
      _
    $region17: #{tpu_custom_call.1} parent=1 // pred_fallthru
      _
    // Predicated region
    $region18: #{tpu_custom_call.1} parent=1 // pred_check
      _
    $region19: #{tpu_custom_call.1} parent=1 // pred_check_branch
      %43 = sbr.rel (0) target = $region21
    $region20: #{tpu_custom_call.1} parent=1 // pred_region
      %44 = dma.done [#allocation5], 256
    $region21: #{tpu_custom_call.1} parent=1 // pred_fallthru
      _
    // Predicated region
    $region22: #{tpu_custom_call.1} parent=1 // pred_check
      _
    $region23: #{tpu_custom_call.1} parent=1 // pred_check_branch
      %46 = sbr.rel (0) target = $region25
    $region24: #{tpu_custom_call.1} parent=1 // pred_region
      %47 = dma.done [#allocation8], 256
    $region25: #{tpu_custom_call.1} parent=1 // pred_fallthru
      _
    %v48 = vld [vmem:[#allocation4] sm:$0xff]
    %v49 = vld [vmem:[#allocation4 + $0x8] sm:$0xff]
    %v50 = vld [vmem:[#allocation7] sm:$0xff]
    %v51 = vld [vmem:[#allocation7 + $0x8] sm:$0xff]
    %v52 = vadd.f32 %v48, %v50
    %v53 = vadd.f32 %v49, %v51
    %vm54 = vcmask 261120
    %v55 = vsel %vm54, %v52, 0.0
    %56 = vadd.xlane.f32.xlu0 %v55
    %v57 = vpop.xlane.xlu0 %56
    %v58 = vsel %vm54, %v53, 0.0
    %59 = vadd.xlane.f32.xlu0 %v58
    %v60 = vpop.xlane.xlu0 %59
    %v61 = vrcp.pop 32.0
    %v62 = vmul.f32 %v57, %v61
    %v63 = vmul.f32 %v60, %v61
    %v64 = vsub.f32 %v52, %v62
    %v65 = vsub.f32 %v53, %v63
    %v66 = vmul.f32 %v64, %v64
    %v67 = vmul.f32 %v65, %v65
    %v68 = vsel %vm54, %v66, 0.0
    %69 = vadd.xlane.f32.xlu0 %v68
    %v70 = vpop.xlane.xlu0 %69
    %v71 = vsel %vm54, %v67, 0.0
    %72 = vadd.xlane.f32.xlu0 %v71
    %v73 = vpop.xlane.xlu0 %72
    %v74 = vmul.f32 %v70, %v61
    %v75 = vmul.f32 %v73, %v61
    %v76 = vadd.f32 %v74, 1e-05
    %v77 = vadd.f32 %v75, 1e-05
    %v78 = vrsqrt.pop %v76
    %v79 = vrsqrt.pop %v77
    %v80 = vld [vmem:[%s3] sm:$0x1]
    %v81 = vld [vmem:[%s4] sm:$0x1]
    %v82 = vmul.f32 %v64, %v78
    %v83 = vmul.f32 %v65, %v79
    %v85 = vlaneseq
    %v86 = vshrl.u32 %v85, 7
    %v87 = vsub.s32 0, %v86
    %v88 = vrot.slane %v80, %v87
    %v90 = vmul.f32 %v82, %v88
    %v91 = vmul.f32 %v83, %v88
    %v93 = vlaneseq
    %v94 = vshrl.u32 %v93, 7
    %v95 = vsub.s32 0, %v94
    %v96 = vrot.slane %v81, %v95
    %v98 = vadd.f32 %v90, %v96
    %v99 = vadd.f32 %v91, %v96
    %100 = vst.msk [vmem:[#allocation9] sm:$0xff] %vm54, %v98
    %101 = vst.msk [vmem:[#allocation9 + $0x8] sm:$0xff] %vm54, %v99
    // Predicated region
    $region26: #{tpu_custom_call.1} parent=1 // pred_check
      _
    $region27: #{tpu_custom_call.1} parent=1 // pred_check_branch
      %103 = sbr.rel (0) target = $region29
    $region28: #{tpu_custom_call.1} parent=1 // pred_region
      %s105 = ssub.s32 256, 256
      %106 = vsyncadd [#allocation6], %s105
      %s107 = sshll.u32 [#allocation9], 4
      %s108 = int_to_ptr.vmem [resolvable:$true] %s107
      %113 = dma.vmem_to_hbm [thread:$0]  %s108, 256, %s5, [#allocation6], 128, 128, 8
    $region29: #{tpu_custom_call.1} parent=1 // pred_fallthru
      _
    // Predicated region
    $region30: #{tpu_custom_call.1} parent=1 // pred_check
      _
    $region31: #{tpu_custom_call.1} parent=1 // pred_check_branch
      %115 = sbr.rel (0) target = $region33
    $region32: #{tpu_custom_call.1} parent=1 // pred_region
      %116 = dma.done [#allocation6], 256
    $region33: #{tpu_custom_call.1} parent=1 // pred_fallthru
      _
    %117 = vsyncpa [#allocation5], 1
    %118 = vsyncpa [#allocation8], 1
    %119 = vsyncpa [#allocation6], 1

</llo_original>
